<compile_context>
chip_gen: v5e
topology: v5e:2x2
jax: 0.10.0
libtpu: 0.0.40
codegen_flags: <defaults>
</compile_context>

<pallas_src>
import jax
import jax.numpy as jnp
from jax.experimental import pallas as pl
from jax.experimental.pallas import tpu as pltpu


def avg_readout_kernel(mask_ref, emb_ref, out_ref, acc_ref, rsum_ref):
    k = pl.program_id(1)  # reduction (node) axis — innermost, "arbitrary"

    @pl.when(k == 0)
    def _():
        acc_ref[...] = jnp.zeros_like(acc_ref)
        rsum_ref[...] = jnp.zeros_like(rsum_ref)

    m = mask_ref[...]
    # vsum partial: (tm, tk) @ (tk, D), accumulated in f32 on the MXU.
    acc_ref[...] += jnp.dot(m, emb_ref[...], preferred_element_type=jnp.float32)
    # row_sum partial: sum of the mask tile over the node axis.
    rsum_ref[...] += jnp.sum(m.astype(jnp.float32), axis=1, keepdims=True)

    @pl.when(k == pl.num_programs(1) - 1)
    def _():
        # 1/row_sum on the EUP; its approx error is a uniform per-row scale and
        # cancels exactly in the L2 normalisation below.
        inv = pl.reciprocal(rsum_ref[...], approx=True)
        g = acc_ref[...] * inv                                   # vsum / row_sum
        sumsq = jnp.sum(g * g, axis=1, keepdims=True)
        # F.normalize(p=2, dim=1): x / max(||x||, 1e-12) == x * rsqrt(max(sumsq, 1e-24))
        out_ref[...] = (g * jax.lax.rsqrt(jnp.maximum(sumsq, 1e-24))).astype(out_ref.dtype)


def avg_readout(emb, mask, *, tm=None, tk=None, compute_dtype=jnp.bfloat16):
    """emb: (N, D), mask: (M, N) -> (M, D).

    compute_dtype: dtype the inputs are streamed from HBM in (bf16 default for
    half the HBM traffic; accumulation is always f32).  Pass None / jnp.float32
    to stream at full precision.
    """
    N, D = emb.shape
    M, N2 = mask.shape
    assert N == N2

    out_dtype = emb.dtype
    if compute_dtype is None:
        compute_dtype = emb.dtype

    # ---- tile selection (big reduction tile; parallel M axis) -------------
    if tk is None:
        if N <= 2048:
            tk = N                      # whole reduction in one (or few) big steps
        else:
            tk = next((c for c in (2048, 1024, 512, 256, 128) if N % c == 0), N)
    if tm is None:
        if M <= 512:
            tm = M
        else:
            tm = next((c for c in (512, 256, 128, 64, 32, 16, 8) if M % c == 0), M)
    assert N % tk == 0 and M % tm == 0

    cbytes = jnp.dtype(compute_dtype).itemsize
    obytes = jnp.dtype(out_dtype).itemsize

    def vmem_need(tm_, tk_):
        return (2 * (tm_ * tk_ + tk_ * D) * cbytes   # double-buffered mask + emb tiles
                + 2 * tm_ * D * obytes               # double-buffered output tile
                + tm_ * D * 4                        # resident f32 accumulator
                + tm_ * 128 * 4)                     # (tm,1) rsum pads lanes to 128

    # Keep under ~40 MiB so full double-buffering survives v7x's 64 MiB VMEM.
    target = 40 << 20
    while vmem_need(tm, tk) > target and tk > 128 and tk % 2 == 0 and N % (tk // 2) == 0:
        tk //= 2
    while vmem_need(tm, tk) > target and tm > 8 and tm % 2 == 0:
        tm //= 2

    vmem_limit = max(int(vmem_need(tm, tk) * 1.25) + (2 << 20), 32 << 20)
    vmem_limit = min(vmem_limit, 64 << 20)

    mask_c = mask.astype(compute_dtype)
    emb_c = emb.astype(compute_dtype)

    return pl.pallas_call(
        avg_readout_kernel,
        out_shape=jax.ShapeDtypeStruct((M, D), out_dtype),
        grid_spec=pltpu.PrefetchScalarGridSpec(
            num_scalar_prefetch=0,
            grid=(M // tm, N // tk),
            in_specs=[
                # mask tile: (tm, tk) — row block i, node block k
                pl.BlockSpec((tm, tk), lambda i, k: (i, k)),
                # emb tile: (tk, D) — node block k, full feature dim
                # (if DMA were still exposed, pipeline_mode=pl.Buffered(3) here)
                pl.BlockSpec((tk, D), lambda i, k: (k, 0)),
            ],
            out_specs=pl.BlockSpec((tm, D), lambda i, k: (i, 0)),
            scratch_shapes=[
                pltpu.VMEM((tm, D), jnp.float32),   # vsum accumulator
                pltpu.VMEM((tm, 1), jnp.float32),   # row_sum accumulator
            ],
        ),
        compiler_params=pltpu.CompilerParams(
            dimension_semantics=("parallel", "arbitrary"),
            vmem_limit_bytes=vmem_limit,
        ),
    )(mask_c, emb_c)


def avg_readout_ref(emb, mask):
    vsum = mask @ emb
    row_sum = jnp.sum(mask, axis=1, keepdims=True)
    g = vsum / row_sum
    norm = jnp.maximum(jnp.sqrt(jnp.sum(g * g, axis=1, keepdims=True)), 1e-12)
    return g / norm


if __name__ == "__main__":
    M, N, D = 8, 256, 128  # small shapes; whole reduction fits one tile (tk = N)
    key = jax.random.PRNGKey(0)
    k_emb, k_mask = jax.random.split(key)

    emb = jax.random.normal(k_emb, (N, D), dtype=jnp.float32)
    # Positive mask so row sums are strictly > 0 (mirrors an adjacency/weight mask).
    mask = jax.random.uniform(k_mask, (M, N), dtype=jnp.float32, minval=0.1, maxval=1.0)

    ref = avg_readout_ref(emb, mask)

    # Exact-precision streaming path: tight check against the reference.
    out_f32 = jax.block_until_ready(avg_readout(emb, mask, compute_dtype=jnp.float32))
    assert out_f32.shape == (M, D)
    assert jnp.allclose(out_f32, ref, atol=1e-5, rtol=1e-5)

    # Default bf16-streaming path (halved HBM traffic, f32 accumulation).
    out_bf16 = jax.block_until_ready(avg_readout(emb, mask))
    assert out_bf16.shape == (M, D)
    assert jnp.allclose(out_bf16, ref, atol=2e-2, rtol=2e-2)

    print("KERNEL_OK")
</pallas_src>

<mosaic_0001>
module attributes {stable_mosaic.version = 11 : i64} {
  func.func @avg_readout_kernel(%arg0: i32, %arg1: i32, %arg2: memref<8x256xf32, #tpu.memory_space<vmem>>, %arg3: memref<256x128xf32, #tpu.memory_space<vmem>>, %arg4: memref<8x128xf32, #tpu.memory_space<vmem>>, %arg5: memref<8x128xf32, #tpu.memory_space<vmem>>, %arg6: memref<8x1xf32, #tpu.memory_space<vmem>>) attributes {dimension_semantics = [#tpu.dimension_semantics<parallel>, #tpu.dimension_semantics<arbitrary>], iteration_bounds = array<i64: 1, 1>, scalar_prefetch = 0 : i64, scratch_operands = 2 : i64, tpu.core_type = #tpu.core_type<tc>, window_params = [{transform_indices = @transform_0, window_bounds = array<i64: 8, 256>}, {transform_indices = @transform_1, window_bounds = array<i64: 256, 128>}, {transform_indices = @transform_2, window_bounds = array<i64: 8, 128>}]} {
    %c0_i32 = arith.constant 0 : i32
    %0 = arith.cmpi eq, %arg1, %c0_i32 : i32
    %1 = arith.extui %0 : i1 to i32
    %c0_i32_0 = arith.constant 0 : i32
    %2 = arith.cmpi ne, %1, %c0_i32_0 : i32
    scf.if %2 {
      %cst_15 = arith.constant 0.000000e+00 : f32
      %17 = vector.broadcast %cst_15 : f32 to vector<8x128xf32>
      %c0_16 = arith.constant 0 : index
      %c0_17 = arith.constant 0 : index
      %18 = vector.load %arg5[%c0_16, %c0_17] : memref<8x128xf32, #tpu.memory_space<vmem>>, vector<8x128xf32>
      tpu.vector_store %arg5[%c0_16, %c0_17], %17 {strides = array<i32>} : memref<8x128xf32, #tpu.memory_space<vmem>>, vector<8x128xf32>,
      %cst_18 = arith.constant 0.000000e+00 : f32
      %19 = vector.broadcast %cst_18 : f32 to vector<8x1xf32>
      %c0_19 = arith.constant 0 : index
      %c0_20 = arith.constant 0 : index
      %20 = vector.load %arg6[%c0_19, %c0_20] : memref<8x1xf32, #tpu.memory_space<vmem>>, vector<8x1xf32>
      tpu.vector_store %arg6[%c0_19, %c0_20], %19 {strides = array<i32>} : memref<8x1xf32, #tpu.memory_space<vmem>>, vector<8x1xf32>,
    } else {
    }
    %c0 = arith.constant 0 : index
    %c0_1 = arith.constant 0 : index
    %3 = vector.load %arg2[%c0, %c0_1] : memref<8x256xf32, #tpu.memory_space<vmem>>, vector<8x256xf32>
    %c0_2 = arith.constant 0 : index
    %c0_3 = arith.constant 0 : index
    %4 = vector.load %arg5[%c0_2, %c0_3] : memref<8x128xf32, #tpu.memory_space<vmem>>, vector<8x128xf32>
    %c0_4 = arith.constant 0 : index
    %c0_5 = arith.constant 0 : index
    %5 = vector.load %arg3[%c0_4, %c0_5] : memref<256x128xf32, #tpu.memory_space<vmem>>, vector<256x128xf32>
    %cst = arith.constant dense<0.000000e+00> : vector<8x128xf32>
    %6 = tpu.matmul %3, %5, %cst {dimension_numbers = #tpu.dot_dimension_numbers<[1], [0], [0], [1], [0, 0, 1, 1], [], []>} : vector<8x256xf32>, vector<256x128xf32>, vector<8x128xf32> -> vector<8x128xf32>
    %7 = arith.addf %4, %6 : vector<8x128xf32>
    %c0_6 = arith.constant 0 : index
    %c0_7 = arith.constant 0 : index
    %8 = vector.load %arg5[%c0_6, %c0_7] : memref<8x128xf32, #tpu.memory_space<vmem>>, vector<8x128xf32>
    tpu.vector_store %arg5[%c0_6, %c0_7], %7 {strides = array<i32>} : memref<8x128xf32, #tpu.memory_space<vmem>>, vector<8x128xf32>,
    %c0_8 = arith.constant 0 : index
    %c0_9 = arith.constant 0 : index
    %9 = vector.load %arg6[%c0_8, %c0_9] : memref<8x1xf32, #tpu.memory_space<vmem>>, vector<8x1xf32>
    %cst_10 = arith.constant dense<0.000000e+00> : vector<8xf32>
    %10 = vector.multi_reduction <add>, %3, %cst_10 [1] : vector<8x256xf32> to vector<8xf32>
    %11 = vector.shape_cast %10 : vector<8xf32> to vector<8x1xf32>
    %12 = arith.addf %9, %11 : vector<8x1xf32>
    %c0_11 = arith.constant 0 : index
    %c0_12 = arith.constant 0 : index
    %13 = vector.load %arg6[%c0_11, %c0_12] : memref<8x1xf32, #tpu.memory_space<vmem>>, vector<8x1xf32>
    tpu.vector_store %arg6[%c0_11, %c0_12], %12 {strides = array<i32>} : memref<8x1xf32, #tpu.memory_space<vmem>>, vector<8x1xf32>,
    %c0_i32_13 = arith.constant 0 : i32
    %14 = arith.cmpi eq, %arg1, %c0_i32_13 : i32
    %15 = arith.extui %14 : i1 to i32
    %c0_i32_14 = arith.constant 0 : i32
    %16 = arith.cmpi ne, %15, %c0_i32_14 : i32
    scf.if %16 {
      %c0_15 = arith.constant 0 : index
      %c0_16 = arith.constant 0 : index
      %17 = vector.load %arg6[%c0_15, %c0_16] : memref<8x1xf32, #tpu.memory_space<vmem>>, vector<8x1xf32>
      %18 = tpu.reciprocal %17 {approx = true} : vector<8x1xf32> -> vector<8x1xf32>
      %c0_17 = arith.constant 0 : index
      %c0_18 = arith.constant 0 : index
      %19 = vector.load %arg5[%c0_17, %c0_18] : memref<8x128xf32, #tpu.memory_space<vmem>>, vector<8x128xf32>
      %20 = vector.broadcast %18 : vector<8x1xf32> to vector<8x128xf32>
      %21 = arith.mulf %19, %20 : vector<8x128xf32>
      %22 = arith.mulf %21, %21 : vector<8x128xf32>
      %cst_19 = arith.constant dense<0.000000e+00> : vector<8xf32>
      %23 = vector.multi_reduction <add>, %22, %cst_19 [1] : vector<8x128xf32> to vector<8xf32>
      %24 = vector.shape_cast %23 : vector<8xf32> to vector<8x1xf32>
      %cst_20 = arith.constant 1.000000e-24 : f32
      %25 = vector.broadcast %cst_20 : f32 to vector<8x1xf32>
      %26 = arith.maximumf %24, %25 : vector<8x1xf32>
      %27 = math.rsqrt %26 : vector<8x1xf32>
      %28 = vector.broadcast %27 : vector<8x1xf32> to vector<8x128xf32>
      %29 = arith.mulf %21, %28 : vector<8x128xf32>
      %c0_21 = arith.constant 0 : index
      %c0_22 = arith.constant 0 : index
      %30 = vector.load %arg4[%c0_21, %c0_22] : memref<8x128xf32, #tpu.memory_space<vmem>>, vector<8x128xf32>
      tpu.vector_store %arg4[%c0_21, %c0_22], %29 {strides = array<i32>} : memref<8x128xf32, #tpu.memory_space<vmem>>, vector<8x128xf32>,
    } else {
    }
    return
  }
  func.func @transform_0(%arg0: i32, %arg1: i32) -> (i32, i32) {
    %c0_i32 = arith.constant 0 : i32
    return %arg0, %arg1 : i32, i32
  }
  func.func @transform_1(%arg0: i32, %arg1: i32) -> (i32, i32) {
    %c0_i32 = arith.constant 0 : i32
    %c0_i32_0 = arith.constant 0 : i32
    return %arg1, %c0_i32 : i32, i32
  }
  func.func @transform_2(%arg0: i32, %arg1: i32) -> (i32, i32) {
    %c0_i32 = arith.constant 0 : i32
    %c0_i32_0 = arith.constant 0 : i32
    return %arg0, %c0_i32 : i32, i32
  }
}

</mosaic_0001>

<llo_original>
// kernel: tpu_custom_call.1
$region0: #{tpu_custom_call.1}
  #allocation0 [shape = 'u32[]', space=smem, size = 0x4, offset = 0x4, fixed_abs, tag = 'smem constant byte address 0x4 - core index']
  #allocation1 [shape = 'u32[72,128]{1,0:T(1,128)}', space=vmem, size = 0x9000, scoped, tag = 'internal scratch']
  #allocation2 [shape = 'f32[8,128]{1,0:T(8,128)}', space=vmem, size = 0x1000, scoped, tag = 'scratch operand']
  #allocation3 [shape = 'f32[8,1]{1,0:T(8,128)}', space=vmem, size = 0x1000, scoped, tag = 'scratch operand']
  %s0 = inlined_call_operand.hbm [shape: f32[8,256], index: 0, kind: input, shape index: {}]
  %s1 = inlined_call_operand.hbm [shape: f32[256,128], index: 1, kind: input, shape index: {}]
  %s2 = inlined_call_operand.hbm [shape: f32[8,128], index: 2, kind: output, shape index: {}]
  %s3 = sld [smem:[#allocation0]]
  $region34: #{tpu_custom_call.1} parent=0
    _
  %s5 = ssub.s32 1, %s3
  %s6 = scalar_select 0, %s5, %s3
  $region1: #{tpu_custom_call.1} parent=0
    #allocation4 [shape = 'u8[8192]{0}', space=vmem, size = 0x2000, scoped, tag = 'input window, operand 0, single buffered']
    #allocation5 [shape = 's32[1]{0}', space=sflag, size = 0x4, scoped, tag = 'scoped memory for tpu_custom_call.1']
    #allocation6 [shape = 's32[1]{0}', space=sflag, size = 0x4, scoped, tag = 'scoped memory for tpu_custom_call.1']
    #allocation7 [shape = 'u8[131072]{0}', space=vmem, size = 0x20000, scoped, tag = 'input window, operand 1, single buffered']
    #allocation8 [shape = 's32[1]{0}', space=sflag, size = 0x4, scoped, tag = 'scoped memory for tpu_custom_call.1']
    #allocation9 [shape = 'u8[4096]{0}', space=vmem, size = 0x1000, scoped, tag = 'output window, operand 0, single buffered']
    %7 = vsyncpa [#allocation5], 0
    %8 = vsyncpa [#allocation8], 0
    %9 = vsyncpa [#allocation6], 0
    // Predicated region
    $region2: #{tpu_custom_call.1} parent=1 // pred_check
      _
    $region3: #{tpu_custom_call.1} parent=1 // pred_check_branch
      %11 = sbr.rel (0) target = $region5
    $region4: #{tpu_custom_call.1} parent=1 // pred_region
      %13 = vsyncadd [#allocation5], 0
      %s15 = sshll.u32 %s0, 4
      %s16 = int_to_ptr.hbm [resolvable:$true] %s15
      %s17 = sshll.u32 [#allocation4], 4
      %s18 = int_to_ptr.vmem [resolvable:$true] %s17
      %20 = dma.hbm_to_vmem [thread:$0]  %s16, 256, %s18, [#allocation5]
    $region5: #{tpu_custom_call.1} parent=1 // pred_fallthru
      _
    // Predicated region
    $region6: #{tpu_custom_call.1} parent=1 // pred_check
      _
    $region7: #{tpu_custom_call.1} parent=1 // pred_check_branch
      %22 = sbr.rel (0) target = $region9
    $region8: #{tpu_custom_call.1} parent=1 // pred_region
      %24 = vsyncadd [#allocation8], 0
      %s25 = sshll.u32 %s1, 4
      %s26 = int_to_ptr.hbm [resolvable:$true] %s25
      %s27 = sshll.u32 [#allocation7], 4
      %s28 = int_to_ptr.vmem [resolvable:$true] %s27
      %33 = dma.hbm_to_vmem [thread:$0]  %s26, 4096, %s28, [#allocation8], 128, 128, 8
    $region9: #{tpu_custom_call.1} parent=1 // pred_fallthru
      _
    // Predicated region
    $region10: #{tpu_custom_call.1} parent=1 // pred_check
      _
    $region11: #{tpu_custom_call.1} parent=1 // pred_check_branch
      %35 = sbr.rel (0) target = $region13
    $region12: #{tpu_custom_call.1} parent=1 // pred_region
      %37 = dma.done [#allocation5], 256
    $region13: #{tpu_custom_call.1} parent=1 // pred_fallthru
      _
    // Predicated region
    $region14: #{tpu_custom_call.1} parent=1 // pred_check
      _
    $region15: #{tpu_custom_call.1} parent=1 // pred_check_branch
      %39 = sbr.rel (0) target = $region17
    $region16: #{tpu_custom_call.1} parent=1 // pred_region
      %41 = dma.done [#allocation8], 4096
    $region17: #{tpu_custom_call.1} parent=1 // pred_fallthru
      _
    %p42 = scmp.eq.s32.totalorder 0, 0
    // Predicated region
    $region18: #{tpu_custom_call.1} parent=1 // pred_check
      %p43 = pneg %p42
    $region19: #{tpu_custom_call.1} parent=1 // pred_check_branch
      %45 = sbr.rel (%p43) target = $region21
    $region20: #{tpu_custom_call.1} parent=1 // pred_region
      %46 = vst [vmem:[#allocation2] sm:$0xff] 0.0
      %vm47 = vcmask 7168
      %48 = vst.msk [vmem:[#allocation3] sm:$0xff] %vm47, 0.0
    $region21: #{tpu_custom_call.1} parent=1 // pred_fallthru
      _
    %v49 = vld [vmem:[#allocation4] sm:$0xff]
    %v50 = vld [vmem:[#allocation4 + $0x8] sm:$0xff]
    %v51 = vld [vmem:[#allocation2] sm:$0xff]
    %v52 = vld [vmem:[#allocation7] sm:$0xff]
    %v53 = vld [vmem:[#allocation7 + $0x8] sm:$0xff]
    %v54 = vld [vmem:[#allocation7 + $0x10] sm:$0xff]
    %v55 = vld [vmem:[#allocation7 + $0x18] sm:$0xff]
    %v56 = vld [vmem:[#allocation7 + $0x20] sm:$0xff]
    %v57 = vld [vmem:[#allocation7 + $0x28] sm:$0xff]
    %v58 = vld [vmem:[#allocation7 + $0x30] sm:$0xff]
    %v59 = vld [vmem:[#allocation7 + $0x38] sm:$0xff]
    %v60 = vld [vmem:[#allocation7 + $0x40] sm:$0xff]
    %v61 = vld [vmem:[#allocation7 + $0x48] sm:$0xff]
    %v62 = vld [vmem:[#allocation7 + $0x50] sm:$0xff]
    %v63 = vld [vmem:[#allocation7 + $0x58] sm:$0xff]
    %v64 = vld [vmem:[#allocation7 + $0x60] sm:$0xff]
    %v65 = vld [vmem:[#allocation7 + $0x68] sm:$0xff]
    %v66 = vld [vmem:[#allocation7 + $0x70] sm:$0xff]
    %v67 = vld [vmem:[#allocation7 + $0x78] sm:$0xff]
    %v68 = vld [vmem:[#allocation7 + $0x80] sm:$0xff]
    %v69 = vld [vmem:[#allocation7 + $0x88] sm:$0xff]
    %v70 = vld [vmem:[#allocation7 + $0x90] sm:$0xff]
    %v71 = vld [vmem:[#allocation7 + $0x98] sm:$0xff]
    %v72 = vld [vmem:[#allocation7 + $0xa0] sm:$0xff]
    %v73 = vld [vmem:[#allocation7 + $0xa8] sm:$0xff]
    %v74 = vld [vmem:[#allocation7 + $0xb0] sm:$0xff]
    %v75 = vld [vmem:[#allocation7 + $0xb8] sm:$0xff]
    %v76 = vld [vmem:[#allocation7 + $0xc0] sm:$0xff]
    %v77 = vld [vmem:[#allocation7 + $0xc8] sm:$0xff]
    %v78 = vld [vmem:[#allocation7 + $0xd0] sm:$0xff]
    %v79 = vld [vmem:[#allocation7 + $0xd8] sm:$0xff]
    %v80 = vld [vmem:[#allocation7 + $0xe0] sm:$0xff]
    %v81 = vld [vmem:[#allocation7 + $0xe8] sm:$0xff]
    %v82 = vld [vmem:[#allocation7 + $0xf0] sm:$0xff]
    %v83 = vld [vmem:[#allocation7 + $0xf8] sm:$0xff]
    %84 = vmatpush.msra.mxu0 %v67
    %85 = vmatpush.msra.mxu0 %v66
    %86 = vmatpush.msra.mxu0 %v65
    %87 = vmatpush.msra.mxu0 %v64
    %88 = vmatpush.msra.mxu0 %v63
    %89 = vmatpush.msra.mxu0 %v62
    %90 = vmatpush.msra.mxu0 %v61
    %91 = vmatpush.msra.mxu0 %v60
    %92 = vmatpush.msra.mxu0 %v59
    %93 = vmatpush.msra.mxu0 %v58
    %94 = vmatpush.msra.mxu0 %v57
    %95 = vmatpush.msra.mxu0 %v56
    %96 = vmatpush.msra.mxu0 %v55
    %97 = vmatpush.msra.mxu0 %v54
    %98 = vmatpush.msra.mxu0 %v53
    %99 = vmatpush.msra.mxu0 %v52
    %100 = vmatmul.f32.gmra.mxu0 %v49
    %v101 = vpop.f32.mrf.mxu0
    %v102 = vadd.f32 0.0, %v101
    %103 = vdwg.mxu0
    %104 = vmatpush.msra.mxu0 %v83
    %105 = vmatpush.msra.mxu0 %v82
    %106 = vmatpush.msra.mxu0 %v81
    %107 = vmatpush.msra.mxu0 %v80
    %108 = vmatpush.msra.mxu0 %v79
    %109 = vmatpush.msra.mxu0 %v78
    %110 = vmatpush.msra.mxu0 %v77
    %111 = vmatpush.msra.mxu0 %v76
    %112 = vmatpush.msra.mxu0 %v75
    %113 = vmatpush.msra.mxu0 %v74
    %114 = vmatpush.msra.mxu0 %v73
    %115 = vmatpush.msra.mxu0 %v72
    %116 = vmatpush.msra.mxu0 %v71
    %117 = vmatpush.msra.mxu0 %v70
    %118 = vmatpush.msra.mxu0 %v69
    %119 = vmatpush.msra.mxu0 %v68
    %120 = vmatmul.f32.gmra.mxu0 %v50
    %v121 = vpop.f32.mrf.mxu0
    %v122 = vadd.f32 %v102, %v121
    %123 = vdwg.mxu0
    %v124 = vadd.f32 %v51, %v122
    %125 = vst [vmem:[#allocation2] sm:$0xff] %v124
    %v126 = vld [vmem:[#allocation3] sm:$0xff]
    %v127 = vadd.f32 %v49, %v50
    %128 = vadd.xlane.f32.xlu0 %v127
    %v129 = vpop.xlane.xlu0 %128
    %v130 = vadd.f32 %v126, %v129
    %vm131 = vcmask 7168
    %132 = vst.msk [vmem:[#allocation3] sm:$0xff] %vm131, %v130
    // Predicated region
    $region22: #{tpu_custom_call.1} parent=1 // pred_check
      %p133 = pneg %p42
    $region23: #{tpu_custom_call.1} parent=1 // pred_check_branch
      %135 = sbr.rel (%p133) target = $region25
    $region24: #{tpu_custom_call.1} parent=1 // pred_region
      %v136 = vld [vmem:[#allocation3] sm:$0xff]
      %v137 = vrcp.pop %v136
      %v138 = vld [vmem:[#allocation2] sm:$0xff]
      %140 = vset.pattern.permute.xlu0 0
      %141 = vperm.xlu0 %140, %v137
      %v142 = vpop.permute.xlu0 %141
      %v144 = vmul.f32 %v138, %v142
      %v145 = vmul.f32 %v144, %v144
      %146 = vadd.xlane.f32.xlu0 %v145
      %v147 = vpop.xlane.xlu0 %146
      %v148 = vmax.f32 %v147, 1e-24
      %v149 = vrsqrt.pop %v148
      %v150 = vmul.f32 %v149, %v148
      %v151 = vmul.f32 %v150, %v149
      %v152 = vmul.f32 0.5, %v151
      %v153 = vsub.f32 1.5, %v152
      %v154 = vmul.f32 %v149, %v153
      %vm155 = vweird.f32 %v148
      %vm156 = vweird.f32 %v149
      %vm157 = vmor %vm155, %vm156
      %v158 = vsel %vm157, %v149, %v154
      %v159 = vmul.f32 %v144, %v158
      %160 = vst [vmem:[#allocation9] sm:$0xff] %v159
    $region25: #{tpu_custom_call.1} parent=1 // pred_fallthru
      _
    // Predicated region
    $region26: #{tpu_custom_call.1} parent=1 // pred_check
      _
    $region27: #{tpu_custom_call.1} parent=1 // pred_check_branch
      %162 = sbr.rel (0) target = $region29
    $region28: #{tpu_custom_call.1} parent=1 // pred_region
      %164 = vsyncadd [#allocation6], 0
      %s166 = sshll.u32 [#allocation9], 4
      %s167 = int_to_ptr.vmem [resolvable:$true] %s166
      %s168 = sshll.u32 %s2, 4
      %s169 = int_to_ptr.hbm [resolvable:$true] %s168
      %171 = dma.vmem_to_hbm [thread:$0]  %s167, 128, %s169, [#allocation6]
    $region29: #{tpu_custom_call.1} parent=1 // pred_fallthru
      _
    // Predicated region
    $region30: #{tpu_custom_call.1} parent=1 // pred_check
      _
    $region31: #{tpu_custom_call.1} parent=1 // pred_check_branch
      %173 = sbr.rel (0) target = $region33
    $region32: #{tpu_custom_call.1} parent=1 // pred_region
      %175 = dma.done [#allocation6], 128
    $region33: #{tpu_custom_call.1} parent=1 // pred_fallthru
      _
    %176 = vsyncpa [#allocation5], 1
    %177 = vsyncpa [#allocation8], 1
    %178 = vsyncpa [#allocation6], 1

</llo_original>
